<compile_context>
chip_gen: v7x
topology: tpu7x:2x2x1
jax: 0.10.0
libtpu: 0.0.40
codegen_flags: <defaults>
</compile_context>

<pallas_src>
import functools

import jax
import jax.numpy as jnp
from jax.experimental import pallas as pl
from jax.experimental.pallas import tpu as pltpu

ALPHA = 1.0
GAMMA = 2  # specialized below as an explicit square (w * w)


def _focal_loss_kernel(logits_ref, targets_ref, partial_ref, *, n_rows, tile_rows):
    i = pl.program_id(0)

    logits = logits_ref[...].astype(jnp.float32)               # (TN, C) f32
    tgt = targets_ref[...]                                      # (TN, 1) int32

    # Numerically-stable log-softmax cross entropy, reduction='none'.
    m = jnp.max(logits, axis=-1, keepdims=True)                 # (TN, 1)
    shifted = logits - m                                         # (TN, C)
    lse = jnp.log(jnp.sum(jnp.exp(shifted), axis=-1, keepdims=True))  # (TN, 1)

    # Target-class (shifted) logit via select + lane reduction (no bool cast).
    class_ids = jax.lax.broadcasted_iota(jnp.int32, logits.shape, 1)   # (TN, C)
    tgt_shifted = jnp.sum(jnp.where(class_ids == tgt, shifted, 0.0),
                          axis=-1, keepdims=True)                # (TN, 1)

    ce = lse - tgt_shifted                                       # per-sample CE
    pt = jnp.exp(-ce)                                            # prob of true class
    w = 1.0 - pt
    focal = ALPHA * w * w * ce                                   # gamma = 2 as square

    # Mask rows beyond the true batch size (partial last block).  Keep this a
    # select (not a multiply): OOB rows may hold garbage/NaN and NaN*0 = NaN.
    row_ids = i * tile_rows + jax.lax.broadcasted_iota(jnp.int32, focal.shape, 0)
    focal = jnp.where(row_ids < n_rows, focal, 0.0)

    # One full, unmasked (8, 128) lane-dense tile per grid step with this
    # block's partial sum.
    partial_ref[...] = jnp.broadcast_to(jnp.sum(focal), partial_ref.shape).astype(
        jnp.float32
    )


def _vmem_capacity_bytes() -> int:
    """Physical per-core VMEM; conservative (v7x) fallback if the query fails."""
    try:
        info = pltpu.get_tpu_info()
        cap = getattr(info, "vmem_capacity_bytes", None)
        if cap:
            return int(cap)
    except Exception:  # noqa: BLE001 - not on TPU / API drift: use safe default
        pass
    return 64 * 1024 * 1024


def focal_loss(outputs: jax.Array, targets: jax.Array) -> jax.Array:
    """outputs: (N, C) float logits (any float dtype); targets: (N,) int indices."""
    n, c = outputs.shape
    targets_2d = targets.astype(jnp.int32).reshape(n, 1)

    # ---- Per-generation VMEM budgets -------------------------------------
    vmem_cap = _vmem_capacity_bytes()
    if vmem_cap <= 64 * 1024 * 1024:
        # v7x: 64 MiB per TensorCore -> smaller tiles, headroom for Mosaic temps.
        tile_vmem_budget = 36 * 1024 * 1024
        vmem_limit = 46 * 1024 * 1024
    else:
        # v5e / v6e: 128 MiB -> bigger tiles (the only lever when HBM-bound).
        tile_vmem_budget = 56 * 1024 * 1024
        vmem_limit = 72 * 1024 * 1024

    # ---- Tile sizing from lane-padded per-row VMEM cost -------------------
    itemsize = jnp.dtype(outputs.dtype).itemsize
    padded_c = -(-c // 128) * 128  # last dim pads to 128 lanes in VMEM
    per_row_bytes = (
        2 * padded_c * itemsize   # double-buffered native-dtype logits block
        + 2 * 128 * 4             # double-buffered (tn,1)->(tn,128) int32 targets
        + 4 * padded_c * 4        # ~4 tile-sized f32 temporaries (shifted, exp, ...)
    )

    if 8 * per_row_bytes > tile_vmem_budget:
        # TODO(synk): add a C-tiled online-logsumexp path (running max/sum scratch,
        # C axis "arbitrary") for very large class counts that don't fit VMEM.
        raise NotImplementedError(
            f"focal_loss: class count C={c} too large for a single-row-tile "
            f"kernel within the {tile_vmem_budget} B VMEM budget."
        )

    if n <= 8:
        tn = n
    else:
        tn = max(8, (tile_vmem_budget // per_row_bytes) // 8 * 8)
        tn = min(tn, (n // 8) * 8)
        # Keep >= 2 grid steps so dimension_semantics=("parallel",) can shard
        # the work across both v7x TensorCores instead of leaving one idle.
        if tn >= n and n >= 16:
            tn = min(tn, max(8, ((n // 2) + 7) // 8 * 8))
    grid = -(-n // tn)

    # TODO(synk): for production shapes with C < 128, fold k=128//C rows into the
    # lane dim (reshape (N,C)->(N//k, k*C) + segmented lane reductions) to stop
    # wasting 1-C/128 of every vreg; matters most on compute-bound v7x.

    kernel = functools.partial(_focal_loss_kernel, n_rows=n, tile_rows=tn)

    partials = pl.pallas_call(
        kernel,
        out_shape=jax.ShapeDtypeStruct((grid, 8, 128), jnp.float32),
        grid=(grid,),
        in_specs=[
            pl.BlockSpec((tn, c), lambda i: (i, 0)),
            pl.BlockSpec((tn, 1), lambda i: (i, 0)),
        ],
        out_specs=pl.BlockSpec((1, 8, 128), lambda i: (i, 0, 0)),
        compiler_params=pltpu.CompilerParams(
            dimension_semantics=("parallel",),
            vmem_limit_bytes=vmem_limit,
        ),
    )(outputs, targets_2d)

    # Tiny final reduction over per-block partial sums; divide by the true N.
    return jnp.sum(partials[:, 0, 0]) / jnp.float32(n)


def focal_loss_ref(outputs, targets):
    """Pure-JAX reference mirroring F.cross_entropy + focal weighting."""
    logp = jax.nn.log_softmax(outputs.astype(jnp.float32), axis=-1)
    ce = -jnp.take_along_axis(logp, targets[:, None].astype(jnp.int32), axis=-1)[:, 0]
    pt = jnp.exp(-ce)
    return jnp.mean(ALPHA * (1.0 - pt) ** GAMMA * ce)


if __name__ == "__main__":
    key = jax.random.PRNGKey(0)
    k_logits, k_tgt, k_logits2, k_tgt2 = jax.random.split(key, 4)

    # Case 1: N=10 is deliberately not a multiple of the 8-row tile so the
    # masked partial-last-block path is exercised (grid = 2).
    N, C = 10, 16
    outputs = jax.random.normal(k_logits, (N, C), dtype=jnp.float32)
    targets = jax.random.randint(k_tgt, (N,), 0, C, dtype=jnp.int32)

    loss = focal_loss(outputs, targets)
    jax.block_until_ready(loss)
    ref = focal_loss_ref(outputs, targets)
    assert jnp.allclose(loss, ref, rtol=1e-5, atol=1e-6), (loss, ref)

    # bf16 ingestion path: cast happens in-kernel, HBM traffic halved.
    outputs_bf16 = outputs.astype(jnp.bfloat16)
    loss_bf16 = focal_loss(outputs_bf16, targets)
    jax.block_until_ready(loss_bf16)
    ref_bf16 = focal_loss_ref(outputs_bf16.astype(jnp.float32), targets)
    assert jnp.allclose(loss_bf16, ref_bf16, rtol=1e-5, atol=1e-6), (loss_bf16, ref_bf16)

    # Case 2: N multiple of 8 that would otherwise fit a single tile — exercises
    # the "grid >= 2 for megacore" clamp (tn = 32, grid = 2).
    N2, C2 = 64, 48
    outputs2 = jax.random.normal(k_logits2, (N2, C2), dtype=jnp.float32)
    targets2 = jax.random.randint(k_tgt2, (N2,), 0, C2, dtype=jnp.int32)
    loss2 = focal_loss(outputs2, targets2)
    jax.block_until_ready(loss2)
    ref2 = focal_loss_ref(outputs2, targets2)
    assert jnp.allclose(loss2, ref2, rtol=1e-5, atol=1e-6), (loss2, ref2)

    print("KERNEL_OK")
</pallas_src>

<mosaic_0001>
module attributes {stable_mosaic.version = 11 : i64} {
  func.func @_focal_loss_kernel(%arg0: i32, %arg1: memref<8x16xf32, #tpu.memory_space<vmem>>, %arg2: memref<8x1xi32, #tpu.memory_space<vmem>>, %arg3: memref<1x8x128xf32, #tpu.memory_space<vmem>>) attributes {dimension_semantics = [#tpu.dimension_semantics<parallel>], iteration_bounds = array<i64: 2>, scalar_prefetch = 0 : i64, scratch_operands = 0 : i64, tpu.core_type = #tpu.core_type<tc>, window_params = [{transform_indices = @transform_0, window_bounds = array<i64: 8, 16>}, {transform_indices = @transform_1, window_bounds = array<i64: 8, 1>}, {transform_indices = @transform_2, window_bounds = array<i64: 1, 8, 128>}]} {
    %c0 = arith.constant 0 : index
    %c0_0 = arith.constant 0 : index
    %0 = vector.load %arg1[%c0, %c0_0] : memref<8x16xf32, #tpu.memory_space<vmem>>, vector<8x16xf32>
    %c0_1 = arith.constant 0 : index
    %c0_2 = arith.constant 0 : index
    %1 = vector.load %arg2[%c0_1, %c0_2] : memref<8x1xi32, #tpu.memory_space<vmem>>, vector<8x1xi32>
    %cst = arith.constant dense<0xFF800000> : vector<8xf32>
    %2 = vector.multi_reduction <maximumf>, %0, %cst [1] : vector<8x16xf32> to vector<8xf32>
    %3 = vector.shape_cast %2 : vector<8xf32> to vector<8x1xf32>
    %4 = vector.broadcast %3 : vector<8x1xf32> to vector<8x16xf32>
    %5 = arith.subf %0, %4 : vector<8x16xf32>
    %6 = math.exp %5 : vector<8x16xf32>
    %cst_3 = arith.constant dense<0.000000e+00> : vector<8xf32>
    %7 = vector.multi_reduction <add>, %6, %cst_3 [1] : vector<8x16xf32> to vector<8xf32>
    %8 = vector.shape_cast %7 : vector<8xf32> to vector<8x1xf32>
    %9 = math.log %8 : vector<8x1xf32>
    %10 = tpu.iota {dimensions = array<i32: 1>} : vector<8x16xi32>
    %11 = vector.broadcast %1 : vector<8x1xi32> to vector<8x16xi32>
    %12 = arith.cmpi eq, %10, %11 : vector<8x16xi32>
    %cst_4 = arith.constant 0.000000e+00 : f32
    %13 = vector.broadcast %cst_4 : f32 to vector<8x16xf32>
    %14 = arith.select %12, %5, %13 : vector<8x16xi1>, vector<8x16xf32>
    %cst_5 = arith.constant dense<0.000000e+00> : vector<8xf32>
    %15 = vector.multi_reduction <add>, %14, %cst_5 [1] : vector<8x16xf32> to vector<8xf32>
    %16 = vector.shape_cast %15 : vector<8xf32> to vector<8x1xf32>
    %17 = arith.subf %9, %16 : vector<8x1xf32>
    %cst_6 = arith.constant 0.000000e+00 : f32
    %18 = vector.broadcast %cst_6 : f32 to vector<8x1xf32>
    %19 = arith.subf %18, %17 : vector<8x1xf32>
    %20 = math.exp %19 : vector<8x1xf32>
    %cst_7 = arith.constant 1.000000e+00 : f32
    %21 = vector.broadcast %cst_7 : f32 to vector<8x1xf32>
    %22 = arith.subf %21, %20 : vector<8x1xf32>
    %cst_8 = arith.constant 1.000000e+00 : f32
    %23 = vector.broadcast %cst_8 : f32 to vector<8x1xf32>
    %24 = arith.mulf %23, %22 : vector<8x1xf32>
    %25 = arith.mulf %24, %22 : vector<8x1xf32>
    %26 = arith.mulf %25, %17 : vector<8x1xf32>
    %c8_i32 = arith.constant 8 : i32
    %27 = arith.muli %arg0, %c8_i32 : i32
    %28 = tpu.iota {dimensions = array<i32: 0>} : vector<8x1xi32>
    %29 = vector.broadcast %27 : i32 to vector<8x1xi32>
    %30 = arith.addi %29, %28 : vector<8x1xi32>
    %c10_i32 = arith.constant 10 : i32
    %31 = vector.broadcast %c10_i32 : i32 to vector<8x1xi32>
    %32 = arith.cmpi slt, %30, %31 : vector<8x1xi32>
    %cst_9 = arith.constant 0.000000e+00 : f32
    %33 = vector.broadcast %cst_9 : f32 to vector<8x1xf32>
    %34 = arith.select %32, %26, %33 : vector<8x1xi1>, vector<8x1xf32>
    %35 = vector.shape_cast %34 : vector<8x1xf32> to vector<1x8x1xf32>
    %cst_10 = arith.constant dense<0.000000e+00> : vector<1xf32>
    %36 = vector.multi_reduction <add>, %35, %cst_10 [1, 2] : vector<1x8x1xf32> to vector<1xf32>
    %37 = vector.shape_cast %36 : vector<1xf32> to vector<1x1x1xf32>
    %38 = vector.extract %37[0, 0, 0] : f32 from vector<1x1x1xf32>
    %39 = vector.broadcast %38 : f32 to vector<1x8x128xf32>
    %c0_11 = arith.constant 0 : index
    %c0_12 = arith.constant 0 : index
    %c0_13 = arith.constant 0 : index
    %40 = vector.load %arg3[%c0_11, %c0_12, %c0_13] : memref<1x8x128xf32, #tpu.memory_space<vmem>>, vector<1x8x128xf32>
    tpu.vector_store %arg3[%c0_11, %c0_12, %c0_13], %39 {strides = array<i32>} : memref<1x8x128xf32, #tpu.memory_space<vmem>>, vector<1x8x128xf32>,
    return
  }
  func.func @transform_0(%arg0: i32) -> (i32, i32) {
    %c0_i32 = arith.constant 0 : i32
    %c0_i32_0 = arith.constant 0 : i32
    return %arg0, %c0_i32 : i32, i32
  }
  func.func @transform_1(%arg0: i32) -> (i32, i32) {
    %c0_i32 = arith.constant 0 : i32
    %c0_i32_0 = arith.constant 0 : i32
    return %arg0, %c0_i32 : i32, i32
  }
  func.func @transform_2(%arg0: i32) -> (i32, i32, i32) {
    %c0_i32 = arith.constant 0 : i32
    %c0_i32_0 = arith.constant 0 : i32
    %c0_i32_1 = arith.constant 0 : i32
    return %arg0, %c0_i32, %c0_i32_0 : i32, i32, i32
  }
}

</mosaic_0001>

<llo_original>
// kernel: tpu_custom_call.1
$region0: #{tpu_custom_call.1}
  #allocation0 [shape = 'u32[]', space=smem, size = 0x4, offset = 0x4, fixed_abs, tag = 'smem constant byte address 0x4 - core index']
  #allocation1 [shape = 'u32[144,128]{1,0:T(1,128)}', space=vmem, size = 0x12000, scoped, tag = 'internal scratch']
  %s0 = inlined_call_operand.vmem [shape: f32[10,16], index: 0, kind: input, shape index: {}]
  %s1 = inlined_call_operand.vmem [shape: s32[10,1], index: 1, kind: input, shape index: {}]
  %s2 = inlined_call_operand.hbm [shape: f32[2,8,128], index: 2, kind: output, shape index: {}]
  %s3 = sld [smem:[#allocation0]]
  $region41: #{tpu_custom_call.1} parent=0
    _
  %s5 = ssub.s32 1, %s3
  %s6 = scalar_select 0, %s5, %s3
  $region1: #{tpu_custom_call.1} parent=0
    #allocation2 [shape = 'u8[8192]{0}', space=vmem, size = 0x2000, scoped, tag = 'output window, operand 0']
    #allocation3 [shape = 's32[2]{0}', space=sflag, size = 0x8, scoped, tag = 'scoped memory for tpu_custom_call.1']
    %7 = vsyncpa [#allocation3], 0
    %s8 = scalar_lea.sflag [#allocation3], 1
    %9 = vsyncpa %s8, 0
    loop: start=0, step=1, limit=4
    $region2: #{tpu_custom_call.1} parent=1 // loop_pre_header
      _
    $region3: #{tpu_custom_call.1} parent=1 // loop_header
      %s11 = sphi 0, %s15
      %p12 = scmp.ge.s32.totalorder %s11, 4
      %s21 = sphi 0, %s23
      %s24 = sphi 0, %s21
      %s25 = sphi 0, %s24
      %s41 = sphi 0, %s25
      %s47 = sphi 0, %s49
      %s50 = sphi 0, %s47
      %s51 = sphi 0, %s50
      %s67 = sphi 0, %s51
      %s73 = sphi 0, %s75
      %s76 = sphi 0, %s73
      %s77 = sphi 0, %s76
      %s93 = sphi 0, %s77
    $region4: #{tpu_custom_call.1} parent=1 // loop_header_branch
      %14 = sbr.rel (%p12) target = $region8
    $region5: #{tpu_custom_call.1} parent=1 // loop_body
      %s16 = ssub.s32 %s11, 1
      %s17 = ssub.s32 %s11, 2
      %s18 = sadd.s32 %s11, 1
      %s19 = ssub.s32 %s11, %s18
      %p20 = scmp.eq.s32.totalorder %s19, 0
      %s22 = sadd.s32 %s21, 1
      %s23 = scalar_select %p20, %s21, %s22
      %p26 = pneg %p20
      %p27 = scmp.eq.s32.totalorder %s11, 1
      %p28 = por %p26, %p27
      %p29 = scmp.ne.s32.totalorder %s21, %s24
      %p30 = scmp.eq.s32.totalorder %s11, 0
      %p31 = por %p29, %p30
      %p32 = scmp.ne.s32.totalorder %s21, %s24
      %p33 = scmp.eq.s32.totalorder %s16, 1
      %p34 = por %p32, %p33
      %p35 = scmp.ne.s32.totalorder %s24, %s25
      %p36 = scmp.eq.s32.totalorder %s16, 0
      %p37 = por %p35, %p36
      %p38 = scmp.ne.s32.totalorder %s24, %s25
      %p39 = scmp.eq.s32.totalorder %s17, 1
      %p40 = por %p38, %p39
      %p42 = scmp.ne.s32.totalorder %s25, %s41
      %p43 = scmp.eq.s32.totalorder %s17, 0
      %p44 = por %p42, %p43
      %s45 = ssub.s32 %s11, %s18
      %p46 = scmp.eq.s32.totalorder %s45, 0
      %s48 = sadd.s32 %s47, 1
      %s49 = scalar_select %p46, %s47, %s48
      %p52 = pneg %p46
      %p53 = scmp.eq.s32.totalorder %s11, 1
      %p54 = por %p52, %p53
      %p55 = scmp.ne.s32.totalorder %s47, %s50
      %p56 = scmp.eq.s32.totalorder %s11, 0
      %p57 = por %p55, %p56
      %p58 = scmp.ne.s32.totalorder %s47, %s50
      %p59 = scmp.eq.s32.totalorder %s16, 1
      %p60 = por %p58, %p59
      %p61 = scmp.ne.s32.totalorder %s50, %s51
      %p62 = scmp.eq.s32.totalorder %s16, 0
      %p63 = por %p61, %p62
      %p64 = scmp.ne.s32.totalorder %s50, %s51
      %p65 = scmp.eq.s32.totalorder %s17, 1
      %p66 = por %p64, %p65
      %p68 = scmp.ne.s32.totalorder %s51, %s67
      %p69 = scmp.eq.s32.totalorder %s17, 0
      %p70 = por %p68, %p69
      %s71 = ssub.s32 %s11, %s18
      %p72 = scmp.eq.s32.totalorder %s71, 0
      %s74 = sadd.s32 %s73, 1
      %s75 = scalar_select %p72, %s73, %s74
      %p78 = pneg %p72
      %p79 = scmp.eq.s32.totalorder %s11, 1
      %p80 = por %p78, %p79
      %p81 = scmp.ne.s32.totalorder %s73, %s76
      %p82 = scmp.eq.s32.totalorder %s11, 0
      %p83 = por %p81, %p82
      %p84 = scmp.ne.s32.totalorder %s73, %s76
      %p85 = scmp.eq.s32.totalorder %s16, 1
      %p86 = por %p84, %p85
      %p87 = scmp.ne.s32.totalorder %s76, %s77
      %p88 = scmp.eq.s32.totalorder %s16, 0
      %p89 = por %p87, %p88
      %p90 = scmp.ne.s32.totalorder %s76, %s77
      %p91 = scmp.eq.s32.totalorder %s17, 1
      %p92 = por %p90, %p91
      %p94 = scmp.ne.s32.totalorder %s77, %s93
      %p95 = scmp.eq.s32.totalorder %s17, 0
      %p96 = por %p94, %p95
      %p97 = scmp.le.s32.totalorder 1, %s11
      %p98 = scmp.lt.s32.totalorder %s11, 3
      %p99 = pnand %p97, %p98
      %p100 = pneg %p99
      // Predicated region
      $region9: #{tpu_custom_call.1} parent=5 // pred_check
        _
      $region10: #{tpu_custom_call.1} parent=5 // pred_check_branch
        %102 = sbr.rel (%p99) target = $region12
      $region11: #{tpu_custom_call.1} parent=5 // pred_region
        %s103 = ssub.s32 %s11, 1
      $region12: #{tpu_custom_call.1} parent=5 // pred_fallthru
        _
      %p104 = scmp.lt.s32.totalorder %s11, 2
      // Predicated region
      $region13: #{tpu_custom_call.1} parent=5 // pred_check
        %p105 = pneg %p104
      $region14: #{tpu_custom_call.1} parent=5 // pred_check_branch
        %107 = sbr.rel (%p105) target = $region16
      $region15: #{tpu_custom_call.1} parent=5 // pred_region
        // Predicated region
        $region17: #{tpu_custom_call.1} parent=15 // pred_check
          %p108 = pneg %p31
        $region18: #{tpu_custom_call.1} parent=15 // pred_check_branch
          %110 = sbr.rel (%p108) target = $region20
        $region19: #{tpu_custom_call.1} parent=15 // pred_region
          %p111 = scmp.lt.s32.totalorder %s11, 1
          %s112 = scalar_select %p111, %s11, 1
          %s113 = smul.addr %s112, 8
          %s114 = scalar_lea.vmem %s0, %s113
        $region20: #{tpu_custom_call.1} parent=15 // pred_fallthru
          _
        // Predicated region
        $region21: #{tpu_custom_call.1} parent=15 // pred_check
          %p115 = pneg %p57
        $region22: #{tpu_custom_call.1} parent=15 // pred_check_branch
          %117 = sbr.rel (%p115) target = $region24
        $region23: #{tpu_custom_call.1} parent=15 // pred_region
          %p118 = scmp.lt.s32.totalorder %s11, 1
          %s119 = scalar_select %p118, %s11, 1
          %s120 = smul.addr %s119, 8
          %s121 = scalar_lea.vmem %s1, %s120
        $region24: #{tpu_custom_call.1} parent=15 // pred_fallthru
          _
      $region16: #{tpu_custom_call.1} parent=5 // pred_fallthru
        _
      %p122 = scmp.le.s32.totalorder 1, %s11
      %p123 = scmp.lt.s32.totalorder %s11, 3
      %p124 = pnand %p122, %p123
      %p125 = pneg %p124
      // Predicated region
      $region25: #{tpu_custom_call.1} parent=5 // pred_check
        _
      $region26: #{tpu_custom_call.1} parent=5 // pred_check_branch
        %127 = sbr.rel (%p124) target = $region28
      $region27: #{tpu_custom_call.1} parent=5 // pred_region
        %s128 = ssub.s32 %s11, 1
        %p129 = scmp.lt.s32.totalorder %s16, 1
        %s130 = scalar_select %p129, %s16, 1
        %s131 = smul.addr %s130, 8
        %s132 = scalar_lea.vmem %s0, %s131
        %p133 = pneg %p37
        %p134 = pneg %p34
        %p135 = scmp.lt.s32.totalorder %s16, 1
        %s136 = scalar_select %p135, %s16, 1
        %s137 = smul.addr %s136, 8
        %s138 = scalar_lea.vmem %s1, %s137
        %p139 = pneg %p63
        %p140 = pneg %p60
        %p141 = pneg %p89
        %p142 = pneg %p86
        %s143 = sand.u32 %s76, 1
        %s144 = scalar_lea.sflag [#allocation3], %s143
        %s145 = sand.u32 %s76, 1
        %s146 = smul.addr %s145, 8
        %s147 = scalar_lea.vmem [#allocation2], %s146
        %p148 = scmp.lt.s32.totalorder %s16, 1
        %s149 = scalar_select %p148, %s16, 1
        %s150 = smul.addr %s149, 8
        %s151 = scalar_lea.vmem %s0, %s150
        %p152 = scmp.lt.s32.totalorder %s16, 1
        %s153 = scalar_select %p152, %s16, 1
        %s154 = smul.addr %s153, 8
        %s155 = scalar_lea.vmem %s1, %s154
        %v156 = vld [vmem:[%s151] sm:$0xff]
        %v157 = vld [vmem:[%s155] sm:$0xff]
        %vm158 = vcmask 130048
        %v159 = vsel %vm158, %v156, -inf
        %160 = vmax.xlane.f32.xlu0 %v159
        %v161 = vpop.xlane.xlu0 %160
        %v162 = vsub.f32 %v156, %v161
        %v163 = vmul.f32 %v162, 1.442695
        %v164 = vpow.pop %v163
        %v165 = vsel %vm158, %v164, 0.0
        %166 = vadd.xlane.f32.xlu0 %v165
        %v167 = vpop.xlane.xlu0 %166
        %v168 = vlog2.pop %v167
        %v169 = vmul.f32 %v168, 0.6931472
        %v170 = vlaneseq
        %v171 = vand.u32 %v170, 127
        %172 = vset.pattern.permute.xlu0 0
        %173 = vperm.xlu0 %172, %v157
        %v174 = vpop.permute.xlu0 %173
        %vm175 = vcmp.eq.s32.totalorder %v171, %v174
        %v176 = vsel %vm175, %v162, 0.0
        %v177 = vsel %vm158, %v176, 0.0
        %178 = vadd.xlane.f32.xlu0 %v177
        %v179 = vpop.xlane.xlu0 %178
        %v180 = vsub.f32 %v169, %v179
        %v181 = vsub.f32 0.0, %v180
        %v182 = vmul.f32 %v181, 1.442695
        %v183 = vpow.pop %v182
        %v184 = vsub.f32 1.0, %v183
        %v185 = vmul.f32 %v184, %v184
        %v186 = vmul.f32 %v185, %v180
        %s187 = smul.u32 %s16, 8
        %v188 = vlaneseq
        %v189 = vshrl.u32 %v188, 7
        %v190 = vstv %s187
        %v191 = vadd.s32 %v190, %v189
        %vm192 = vcmp.lt.s32.totalorder %v191, 10
        %v193 = vsel %vm192, %v186, 0.0
        %vm194 = vcmask 7168
        %v195 = vsel %vm194, %v193, 0.0
        %196 = vadd.xlane.f32.xlu0 %v195
        %v197 = vpop.xlane.xlu0 %196
        %v198 = vrot.slane %v197, 4
        %v199 = vadd.f32 %v197, %v198
        %v200 = vrot.slane %v199, 2
        %v201 = vadd.f32 %v199, %v200
        %v202 = vrot.slane %v201, 1
        %v203 = vadd.f32 %v201, %v202
        %s204 = vtos %v203
        %v205 = vstv %s204
        %206 = vst [vmem:[%s147] sm:$0xff] %v205
        %s207 = sand.u32 %s76, 1
        %s208 = scalar_lea.sflag [#allocation3], %s207
        %s209 = sand.u32 %s76, 1
        %s210 = smul.addr %s209, 8
        %s211 = scalar_lea.vmem [#allocation2], %s210
        // Predicated region
        $region29: #{tpu_custom_call.1} parent=27 // pred_check
          %p212 = pneg %p86
        $region30: #{tpu_custom_call.1} parent=27 // pred_check_branch
          %214 = sbr.rel (%p212) target = $region32
        $region31: #{tpu_custom_call.1} parent=27 // pred_region
          %s216 = ssub.s32 128, 128
          %217 = vsyncadd %s208, %s216
          %s218 = smul.addr %s16, 128
          %s219 = scalar_lea.hbm %s2, %s218
          %s221 = sshll.u32 %s211, 4
          %s222 = int_to_ptr.vmem [resolvable:$true] %s221
          %224 = dma.vmem_to_hbm [thread:$0]  %s222, 128, %s219, %s208
        $region32: #{tpu_custom_call.1} parent=27 // pred_fallthru
          _
      $region28: #{tpu_custom_call.1} parent=5 // pred_fallthru
        _
      %p225 = scmp.le.s32.totalorder 2, %s11
      // Predicated region
      $region33: #{tpu_custom_call.1} parent=5 // pred_check
        %p226 = pneg %p225
      $region34: #{tpu_custom_call.1} parent=5 // pred_check_branch
        %228 = sbr.rel (%p226) target = $region36
      $region35: #{tpu_custom_call.1} parent=5 // pred_region
        %s229 = ssub.s32 %s11, 2
        // Predicated region
        $region37: #{tpu_custom_call.1} parent=35 // pred_check
          %p230 = pneg %p92
        $region38: #{tpu_custom_call.1} parent=35 // pred_check_branch
          %232 = sbr.rel (%p230) target = $region40
        $region39: #{tpu_custom_call.1} parent=35 // pred_region
          %s233 = sand.u32 %s77, 1
          %s234 = scalar_lea.sflag [#allocation3], %s233
          %s235 = sand.u32 %s77, 1
          %s236 = smul.addr %s235, 8
          %s237 = scalar_lea.vmem [#allocation2], %s236
          %238 = dma.done %s234, 128
        $region40: #{tpu_custom_call.1} parent=35 // pred_fallthru
          _
      $region36: #{tpu_custom_call.1} parent=5 // pred_fallthru
        _
    $region6: #{tpu_custom_call.1} parent=1 // loop_footer
      %s15 = sadd.s32 1, %s11
    $region7: #{tpu_custom_call.1} parent=1 // loop_footer_branch
      %10 = sbr.rel target = $region3
    $region8: #{tpu_custom_call.1} parent=1 // loop_exit
      _
    %239 = vsyncpa [#allocation3], 1
    %s240 = scalar_lea.sflag [#allocation3], 1
    %241 = vsyncpa %s240, 1

</llo_original>
